<compile_context>
chip_gen: v7x
topology: tpu7x:2x2x1
jax: 0.10.0
libtpu: 0.0.40
codegen_flags: <defaults>
</compile_context>

<pallas_src>
import jax
import jax.numpy as jnp
from jax.experimental import pallas as pl
from jax.experimental.pallas import tpu as pltpu


def attention_kernel(feat_ref, hid_ref,
                     UwT_ref, Ub_ref, WwT_ref, Wb_ref, Aw_ref, Ab_ref,
                     alpha_ref, ctx_ref):
    feats = feat_ref[...]                         # (TB, L, E) f32
    hid = hid_ref[...]                            # (TB, D)   f32
    TB, L, E = feats.shape
    A = UwT_ref.shape[1]                          # padded attention dim

    # ---- U projection: one large 2D MXU matmul (M = TB*L) -------------------
    feats2d = feats.reshape(TB * L, E)
    u_hs = jnp.dot(feats2d, UwT_ref[...],
                   preferred_element_type=jnp.float32)
    u_hs = u_hs.reshape(TB, L, A) + Ub_ref[...]   # (+ (1, A) bias, broadcast)

    # ---- W projection: (TB, D) @ (D, A), pre-transposed weight --------------
    w_ah = jnp.dot(hid, WwT_ref[...],
                   preferred_element_type=jnp.float32) + Wb_ref[...]

    # combined_states = tanh(u_hs + w_ah.unsqueeze(1))
    combined = jnp.tanh(u_hs + w_ah[:, None, :])  # (TB, L, A)

    # ---- attention scores: VPU multiply + lane-axis (XLU) reduce -------------
    # (avoids an N=1 MXU matmul and the non-lane-dense [:, :, 0] slice)
    scores = jnp.sum(combined * Aw_ref[0, :], axis=-1) + Ab_ref[0, 0]  # (TB, L)

    # ---- softmax over L (f32, max-subtracted) --------------------------------
    m = jnp.max(scores, axis=1, keepdims=True)
    e = jnp.exp(scores - m)
    s = jnp.sum(e, axis=1, keepdims=True)
    alpha = e * pl.reciprocal(s, approx=False)    # exact, preserves 1e-5 tol

    # ---- context: VPU weighted sum over L (reuses feats tile in VMEM) --------
    ctx = jnp.sum(feats * alpha[:, :, None], axis=1)   # (TB, E)

    alpha_ref[...] = alpha.astype(alpha_ref.dtype)
    ctx_ref[...] = ctx.astype(ctx_ref.dtype)


def attention_forward(features, hidden_state, params, *, block_b=None):
    """features: (B, L, E) f32, hidden_state: (B, D) f32.

    Returns (alpha (B, L), attention_weights (B, E)).
    """
    B, L, E = features.shape
    D = hidden_state.shape[1]
    A = params['U_w'].shape[0]

    # Pad attention dim to a lane-dense multiple of 128 with zero weights/bias:
    # padded columns produce tanh(0)=0 and contribute 0 to the score sum.
    A_pad = ((A + 127) // 128) * 128
    f32 = jnp.float32
    UwT = jnp.zeros((E, A_pad), f32).at[:, :A].set(params['U_w'].T.astype(f32))
    WwT = jnp.zeros((D, A_pad), f32).at[:, :A].set(params['W_w'].T.astype(f32))
    Ub = jnp.zeros((1, A_pad), f32).at[:, :A].set(params['U_b'].astype(f32))
    Wb = jnp.zeros((1, A_pad), f32).at[:, :A].set(params['W_b'].astype(f32))
    Aw = jnp.zeros((1, A_pad), f32).at[:, :A].set(params['A_w'].astype(f32))
    Ab = params['A_b'].reshape(1, 1).astype(f32)

    # Batch tile size: full batch for tiny B, otherwise a sublane-aligned tile.
    if block_b is None:
        block_b = B if B <= 8 else 8
    TB = block_b
    B_pad = ((B + TB - 1) // TB) * TB
    if B_pad != B:
        features = jnp.pad(features, ((0, B_pad - B), (0, 0), (0, 0)))
        hidden_state = jnp.pad(hidden_state, ((0, B_pad - B), (0, 0)))

    grid = (B_pad // TB,)
    vmem = pltpu.MemorySpace.VMEM
    smem = pltpu.MemorySpace.SMEM

    # TODO(synk): on v6e/v7x at production sizes, cast the matmul operands to
    # bfloat16 (keep f32 accumulation + f32 tanh/softmax) to halve HBM traffic.
    alpha, ctx = pl.pallas_call(
        attention_kernel,
        out_shape=(jax.ShapeDtypeStruct((B_pad, L), jnp.float32),
                   jax.ShapeDtypeStruct((B_pad, E), jnp.float32)),
        grid=grid,
        in_specs=[
            # batch-tiled streams (double-buffered by the pipeline)
            pl.BlockSpec((TB, L, E), lambda b: (b, 0, 0), memory_space=vmem),
            pl.BlockSpec((TB, D), lambda b: (b, 0), memory_space=vmem),
            # weights/biases: constant block index -> stay VMEM-resident
            pl.BlockSpec((E, A_pad), lambda b: (0, 0), memory_space=vmem),
            pl.BlockSpec((1, A_pad), lambda b: (0, 0), memory_space=vmem),
            pl.BlockSpec((D, A_pad), lambda b: (0, 0), memory_space=vmem),
            pl.BlockSpec((1, A_pad), lambda b: (0, 0), memory_space=vmem),
            pl.BlockSpec((1, A_pad), lambda b: (0, 0), memory_space=vmem),
            # scalar bias lives in SMEM (no padded (8,128) VMEM tile)
            pl.BlockSpec(memory_space=smem),
        ],
        out_specs=(
            pl.BlockSpec((TB, L), lambda b: (b, 0), memory_space=vmem),
            pl.BlockSpec((TB, E), lambda b: (b, 0), memory_space=vmem),
        ),
        compiler_params=pltpu.CompilerParams(
            dimension_semantics=("parallel",)),
    )(features, hidden_state, UwT, Ub, WwT, Wb, Aw, Ab)

    return alpha[:B], ctx[:B]


def init_params(key, encoder_dim, decoder_dim, attention_dim):
    kU, kUb, kW, kWb, kA, kAb = jax.random.split(key, 6)
    # PyTorch nn.Linear stores weight as (out_features, in_features); y = x @ W.T + b
    return {
        'U_w': 0.1 * jax.random.normal(kU, (attention_dim, encoder_dim), jnp.float32),
        'U_b': 0.1 * jax.random.normal(kUb, (1, attention_dim), jnp.float32),
        'W_w': 0.1 * jax.random.normal(kW, (attention_dim, decoder_dim), jnp.float32),
        'W_b': 0.1 * jax.random.normal(kWb, (1, attention_dim), jnp.float32),
        'A_w': 0.1 * jax.random.normal(kA, (1, attention_dim), jnp.float32),
        'A_b': 0.1 * jax.random.normal(kAb, (1, 1), jnp.float32),
    }


def attention_reference(features, hidden_state, params):
    u_hs = jnp.einsum('ble,ae->bla', features, params['U_w']) + params['U_b']
    w_ah = hidden_state @ params['W_w'].T + params['W_b']
    combined = jnp.tanh(u_hs + w_ah[:, None, :])
    scores = jnp.einsum('bla,oa->blo', combined, params['A_w'])[:, :, 0] + params['A_b'][0, 0]
    alpha = jax.nn.softmax(scores, axis=1)
    ctx = jnp.sum(features * alpha[:, :, None], axis=1)
    return alpha, ctx


if __name__ == "__main__":
    B, L = 2, 8
    encoder_dim, decoder_dim, attention_dim = 32, 16, 32

    key = jax.random.PRNGKey(0)
    k_feat, k_hid, k_param = jax.random.split(key, 3)

    features = jax.random.normal(k_feat, (B, L, encoder_dim), jnp.float32)
    hidden_state = jax.random.normal(k_hid, (B, decoder_dim), jnp.float32)
    params = init_params(k_param, encoder_dim, decoder_dim, attention_dim)

    alpha, attn_weights = attention_forward(features, hidden_state, params)
    jax.block_until_ready((alpha, attn_weights))

    alpha_ref, ctx_ref = attention_reference(features, hidden_state, params)
    assert jnp.allclose(alpha, alpha_ref, atol=1e-5, rtol=1e-5)
    assert jnp.allclose(attn_weights, ctx_ref, atol=1e-5, rtol=1e-5)

    print("KERNEL_OK")
</pallas_src>

<mosaic_0001>
module attributes {stable_mosaic.version = 11 : i64} {
  func.func @attention_kernel(%arg0: i32, %arg1: memref<2x8x32xf32, #tpu.memory_space<vmem>>, %arg2: memref<2x16xf32, #tpu.memory_space<vmem>>, %arg3: memref<32x128xf32, #tpu.memory_space<vmem>>, %arg4: memref<1x128xf32, #tpu.memory_space<vmem>>, %arg5: memref<16x128xf32, #tpu.memory_space<vmem>>, %arg6: memref<1x128xf32, #tpu.memory_space<vmem>>, %arg7: memref<1x128xf32, #tpu.memory_space<vmem>>, %arg8: memref<1x1xf32, #tpu.memory_space<smem>>, %arg9: memref<2x8xf32, #tpu.memory_space<vmem>>, %arg10: memref<2x32xf32, #tpu.memory_space<vmem>>) attributes {dimension_semantics = [#tpu.dimension_semantics<parallel>], iteration_bounds = array<i64: 1>, scalar_prefetch = 0 : i64, scratch_operands = 0 : i64, tpu.core_type = #tpu.core_type<tc>, window_params = [{transform_indices = @transform_0, window_bounds = array<i64: 2, 8, 32>}, {transform_indices = @transform_1, window_bounds = array<i64: 2, 16>}, {pipeline_mode = #tpu.pipeline_mode<synchronous>, transform_indices = @transform_2, window_bounds = array<i64: 32, 128>}, {pipeline_mode = #tpu.pipeline_mode<synchronous>, transform_indices = @transform_3, window_bounds = array<i64: 1, 128>}, {pipeline_mode = #tpu.pipeline_mode<synchronous>, transform_indices = @transform_4, window_bounds = array<i64: 16, 128>}, {pipeline_mode = #tpu.pipeline_mode<synchronous>, transform_indices = @transform_5, window_bounds = array<i64: 1, 128>}, {pipeline_mode = #tpu.pipeline_mode<synchronous>, transform_indices = @transform_6, window_bounds = array<i64: 1, 128>}, {transform_indices = @transform_7, window_bounds = array<i64: 1, 1>}, {transform_indices = @transform_8, window_bounds = array<i64: 2, 8>}, {transform_indices = @transform_9, window_bounds = array<i64: 2, 32>}]} {
    %c0 = arith.constant 0 : index
    %c0_0 = arith.constant 0 : index
    %c0_1 = arith.constant 0 : index
    %0 = vector.load %arg1[%c0, %c0_0, %c0_1] : memref<2x8x32xf32, #tpu.memory_space<vmem>>, vector<2x8x32xf32>
    %c0_2 = arith.constant 0 : index
    %c0_3 = arith.constant 0 : index
    %1 = vector.load %arg2[%c0_2, %c0_3] : memref<2x16xf32, #tpu.memory_space<vmem>>, vector<2x16xf32>
    %2 = vector.shape_cast %0 : vector<2x8x32xf32> to vector<16x32xf32>
    %c0_4 = arith.constant 0 : index
    %c0_5 = arith.constant 0 : index
    %3 = vector.load %arg3[%c0_4, %c0_5] : memref<32x128xf32, #tpu.memory_space<vmem>>, vector<32x128xf32>
    %cst = arith.constant dense<0.000000e+00> : vector<16x128xf32>
    %4 = tpu.matmul %2, %3, %cst {dimension_numbers = #tpu.dot_dimension_numbers<[1], [0], [0], [1], [0, 0, 1, 1], [], []>} : vector<16x32xf32>, vector<32x128xf32>, vector<16x128xf32> -> vector<16x128xf32>
    %5 = vector.shape_cast %4 : vector<16x128xf32> to vector<2x8x128xf32>
    %c0_6 = arith.constant 0 : index
    %c0_7 = arith.constant 0 : index
    %6 = vector.load %arg4[%c0_6, %c0_7] : memref<1x128xf32, #tpu.memory_space<vmem>>, vector<1x128xf32>
    %7 = vector.shape_cast %6 : vector<1x128xf32> to vector<1x1x128xf32>
    %8 = vector.broadcast %7 : vector<1x1x128xf32> to vector<2x8x128xf32>
    %9 = arith.addf %5, %8 : vector<2x8x128xf32>
    %c0_8 = arith.constant 0 : index
    %c0_9 = arith.constant 0 : index
    %10 = vector.load %arg5[%c0_8, %c0_9] : memref<16x128xf32, #tpu.memory_space<vmem>>, vector<16x128xf32>
    %cst_10 = arith.constant dense<0.000000e+00> : vector<2x128xf32>
    %11 = tpu.matmul %1, %10, %cst_10 {dimension_numbers = #tpu.dot_dimension_numbers<[1], [0], [0], [1], [0, 0, 1, 1], [], []>} : vector<2x16xf32>, vector<16x128xf32>, vector<2x128xf32> -> vector<2x128xf32>
    %c0_11 = arith.constant 0 : index
    %c0_12 = arith.constant 0 : index
    %12 = vector.load %arg6[%c0_11, %c0_12] : memref<1x128xf32, #tpu.memory_space<vmem>>, vector<1x128xf32>
    %13 = vector.broadcast %12 : vector<1x128xf32> to vector<2x128xf32>
    %14 = arith.addf %11, %13 : vector<2x128xf32>
    %15 = vector.shape_cast %14 : vector<2x128xf32> to vector<2x1x128xf32>
    %16 = vector.broadcast %15 : vector<2x1x128xf32> to vector<2x8x128xf32>
    %17 = arith.addf %9, %16 : vector<2x8x128xf32>
    %18 = math.tanh %17 : vector<2x8x128xf32>
    %c0_13 = arith.constant 0 : index
    %c0_14 = arith.constant 0 : index
    %19 = vector.load %arg7[%c0_13, %c0_14] : memref<1x128xf32, #tpu.memory_space<vmem>>, vector<1x128xf32>
    %20 = vector.shape_cast %19 : vector<1x128xf32> to vector<128xf32>
    %21 = vector.shape_cast %20 : vector<128xf32> to vector<1x1x128xf32>
    %22 = vector.broadcast %21 : vector<1x1x128xf32> to vector<2x8x128xf32>
    %23 = arith.mulf %18, %22 : vector<2x8x128xf32>
    %cst_15 = arith.constant dense<0.000000e+00> : vector<2x8xf32>
    %24 = vector.multi_reduction <add>, %23, %cst_15 [2] : vector<2x8x128xf32> to vector<2x8xf32>
    %c0_16 = arith.constant 0 : index
    %c0_17 = arith.constant 0 : index
    %25 = memref.load %arg8[%c0_16, %c0_17] : memref<1x1xf32, #tpu.memory_space<smem>>
    %26 = vector.broadcast %25 : f32 to vector<2x8xf32>
    %27 = arith.addf %24, %26 : vector<2x8xf32>
    %cst_18 = arith.constant dense<0xFF800000> : vector<2xf32>
    %28 = vector.multi_reduction <maximumf>, %27, %cst_18 [1] : vector<2x8xf32> to vector<2xf32>
    %29 = vector.shape_cast %28 : vector<2xf32> to vector<2x1xf32>
    %30 = vector.broadcast %29 : vector<2x1xf32> to vector<2x8xf32>
    %31 = arith.subf %27, %30 : vector<2x8xf32>
    %32 = math.exp %31 : vector<2x8xf32>
    %cst_19 = arith.constant dense<0.000000e+00> : vector<2xf32>
    %33 = vector.multi_reduction <add>, %32, %cst_19 [1] : vector<2x8xf32> to vector<2xf32>
    %34 = vector.shape_cast %33 : vector<2xf32> to vector<2x1xf32>
    %35 = tpu.reciprocal %34 : vector<2x1xf32> -> vector<2x1xf32>
    %36 = vector.broadcast %35 : vector<2x1xf32> to vector<2x8xf32>
    %37 = arith.mulf %32, %36 : vector<2x8xf32>
    %38 = vector.shape_cast %37 : vector<2x8xf32> to vector<2x8x1xf32>
    %39 = vector.broadcast %38 : vector<2x8x1xf32> to vector<2x8x32xf32>
    %40 = arith.mulf %0, %39 : vector<2x8x32xf32>
    %cst_20 = arith.constant dense<0.000000e+00> : vector<2x32xf32>
    %41 = vector.multi_reduction <add>, %40, %cst_20 [1] : vector<2x8x32xf32> to vector<2x32xf32>
    %c0_21 = arith.constant 0 : index
    %c0_22 = arith.constant 0 : index
    %42 = vector.load %arg9[%c0_21, %c0_22] : memref<2x8xf32, #tpu.memory_space<vmem>>, vector<2x8xf32>
    tpu.vector_store %arg9[%c0_21, %c0_22], %37 {strides = array<i32>} : memref<2x8xf32, #tpu.memory_space<vmem>>, vector<2x8xf32>,
    %c0_23 = arith.constant 0 : index
    %c0_24 = arith.constant 0 : index
    %43 = vector.load %arg10[%c0_23, %c0_24] : memref<2x32xf32, #tpu.memory_space<vmem>>, vector<2x32xf32>
    tpu.vector_store %arg10[%c0_23, %c0_24], %41 {strides = array<i32>} : memref<2x32xf32, #tpu.memory_space<vmem>>, vector<2x32xf32>,
    return
  }
  func.func @transform_0(%arg0: i32) -> (i32, i32, i32) {
    %c0_i32 = arith.constant 0 : i32
    %c0_i32_0 = arith.constant 0 : i32
    %c0_i32_1 = arith.constant 0 : i32
    return %arg0, %c0_i32, %c0_i32_0 : i32, i32, i32
  }
  func.func @transform_1(%arg0: i32) -> (i32, i32) {
    %c0_i32 = arith.constant 0 : i32
    %c0_i32_0 = arith.constant 0 : i32
    return %arg0, %c0_i32 : i32, i32
  }
  func.func @transform_2(%arg0: i32) -> (i32, i32) {
    %c0_i32 = arith.constant 0 : i32
    %c0_i32_0 = arith.constant 0 : i32
    %c0_i32_1 = arith.constant 0 : i32
    return %c0_i32, %c0_i32_0 : i32, i32
  }
  func.func @transform_3(%arg0: i32) -> (i32, i32) {
    %c0_i32 = arith.constant 0 : i32
    %c0_i32_0 = arith.constant 0 : i32
    %c0_i32_1 = arith.constant 0 : i32
    return %c0_i32, %c0_i32_0 : i32, i32
  }
  func.func @transform_4(%arg0: i32) -> (i32, i32) {
    %c0_i32 = arith.constant 0 : i32
    %c0_i32_0 = arith.constant 0 : i32
    %c0_i32_1 = arith.constant 0 : i32
    return %c0_i32, %c0_i32_0 : i32, i32
  }
  func.func @transform_5(%arg0: i32) -> (i32, i32) {
    %c0_i32 = arith.constant 0 : i32
    %c0_i32_0 = arith.constant 0 : i32
    %c0_i32_1 = arith.constant 0 : i32
    return %c0_i32, %c0_i32_0 : i32, i32
  }
  func.func @transform_6(%arg0: i32) -> (i32, i32) {
    %c0_i32 = arith.constant 0 : i32
    %c0_i32_0 = arith.constant 0 : i32
    %c0_i32_1 = arith.constant 0 : i32
    return %c0_i32, %c0_i32_0 : i32, i32
  }
  func.func @transform_7(%arg0: i32) -> (i32, i32) {
    %c0_i32 = arith.constant 0 : i32
    %c0_i32_0 = arith.constant 0 : i32
    %c0_i32_1 = arith.constant 0 : i32
    return %c0_i32, %c0_i32_0 : i32, i32
  }
  func.func @transform_8(%arg0: i32) -> (i32, i32) {
    %c0_i32 = arith.constant 0 : i32
    %c0_i32_0 = arith.constant 0 : i32
    return %arg0, %c0_i32 : i32, i32
  }
  func.func @transform_9(%arg0: i32) -> (i32, i32) {
    %c0_i32 = arith.constant 0 : i32
    %c0_i32_0 = arith.constant 0 : i32
    return %arg0, %c0_i32 : i32, i32
  }
}

</mosaic_0001>

<llo_original>
// kernel: tpu_custom_call.1
$region0: #{tpu_custom_call.1}
  #allocation0 [shape = 'u32[]', space=smem, size = 0x4, offset = 0x4, fixed_abs, tag = 'smem constant byte address 0x4 - core index']
  #allocation1 [shape = 'u32[144,128]{1,0:T(1,128)}', space=vmem, size = 0x12000, scoped, tag = 'internal scratch']
  #allocation2 [shape = 'f32[1,1]{1,0:T(1,128)S(6)}', space=smem, size = 0x200, scoped, tag = 'scoped memory for tpu_custom_call.1']
  %s0 = inlined_call_operand.hbm [shape: f32[2,8,32], index: 0, kind: input, shape index: {}]
  %s1 = inlined_call_operand.vmem [shape: f32[2,16], index: 1, kind: input, shape index: {}]
  %s2 = inlined_call_operand.hbm [shape: f32[32,128], index: 2, kind: input, shape index: {}]
  %s3 = inlined_call_operand.hbm [shape: f32[1,128], index: 3, kind: input, shape index: {}]
  %s4 = inlined_call_operand.vmem [shape: f32[16,128], index: 4, kind: input, shape index: {}]
  %s5 = inlined_call_operand.vmem [shape: f32[1,128], index: 5, kind: input, shape index: {}]
  %s6 = inlined_call_operand.vmem [shape: f32[1,128], index: 6, kind: input, shape index: {}]
  %s7 = inlined_call_operand.<no memory space> [shape: f32[1,1], index: 7, kind: input, shape index: {}]
  %s8 = inlined_call_operand.hbm [shape: f32[2,8], index: 8, kind: output, shape index: {0}]
  %s9 = inlined_call_operand.hbm [shape: f32[2,32], index: 9, kind: output, shape index: {1}]
  %10 = xla_tuple %s8, %s9
  %s11 = sld [smem:[#allocation0]]
  $region62: #{tpu_custom_call.1} parent=0
    _
  %s13 = ssub.s32 1, %s11
  %s14 = scalar_select 0, %s13, %s11
  %15 = sst [smem:[#allocation2]] %s7
  $region1: #{tpu_custom_call.1} parent=0
    #allocation3 [shape = 'u8[8192]{0}', space=vmem, size = 0x2000, scoped, tag = 'input window, operand 0, single buffered']
    #allocation4 [shape = 's32[1]{0}', space=sflag, size = 0x4, scoped, tag = 'scoped memory for tpu_custom_call.1']
    #allocation5 [shape = 's32[1]{0}', space=sflag, size = 0x4, scoped, tag = 'scoped memory for tpu_custom_call.1']
    #allocation6 [shape = 'u8[16384]{0}', space=vmem, size = 0x4000, scoped, tag = 'input window, operand 2, single buffered']
    #allocation7 [shape = 's32[1]{0}', space=sflag, size = 0x4, scoped, tag = 'scoped memory for tpu_custom_call.1']
    #allocation8 [shape = 'u8[512]{0}', space=vmem, size = 0x400, scoped, tag = 'input window, operand 3, single buffered']
    #allocation9 [shape = 'u8[1024]{0}', space=vmem, size = 0x400, scoped, tag = 'output window, operand 0, single buffered']
    #allocation10 [shape = 'u8[1024]{0}', space=vmem, size = 0x400, scoped, tag = 'output window, operand 1, single buffered']
    #allocation11 [shape = 's32[1]{0}', space=sflag, size = 0x4, scoped, tag = 'scoped memory for tpu_custom_call.1']
    %16 = vsyncpa [#allocation4], 0
    %17 = vsyncpa [#allocation7], 0
    %18 = vsyncpa [#allocation5], 0
    %19 = vsyncpa [#allocation11], 0
    // Predicated region
    $region2: #{tpu_custom_call.1} parent=1 // pred_check
      _
    $region3: #{tpu_custom_call.1} parent=1 // pred_check_branch
      %21 = sbr.rel (0) target = $region5
    $region4: #{tpu_custom_call.1} parent=1 // pred_region
      %s23 = ssub.s32 256, 256
      %24 = vsyncadd [#allocation4], %s23
      %s25 = sshll.u32 [#allocation3], 4
      %s26 = int_to_ptr.vmem [resolvable:$true] %s25
      %31 = dma.hbm_to_vmem [thread:$0]  %s0, 256, %s26, [#allocation4], 128, 128, 8
    $region5: #{tpu_custom_call.1} parent=1 // pred_fallthru
      _
    // Predicated region
    $region6: #{tpu_custom_call.1} parent=1 // pred_check
      _
    $region7: #{tpu_custom_call.1} parent=1 // pred_check_branch
      %33 = sbr.rel (0) target = $region9
    $region8: #{tpu_custom_call.1} parent=1 // pred_region
      _
    $region9: #{tpu_custom_call.1} parent=1 // pred_fallthru
      _
    // Predicated region
    $region10: #{tpu_custom_call.1} parent=1 // pred_check
      _
    $region11: #{tpu_custom_call.1} parent=1 // pred_check_branch
      %35 = sbr.rel (0) target = $region13
    $region12: #{tpu_custom_call.1} parent=1 // pred_region
      %s37 = ssub.s32 512, 512
      %38 = vsyncadd [#allocation7], %s37
      %s39 = sshll.u32 [#allocation6], 4
      %s40 = int_to_ptr.vmem [resolvable:$true] %s39
      %45 = dma.hbm_to_vmem [thread:$0]  %s2, 512, %s40, [#allocation7], 128, 128, 8
    $region13: #{tpu_custom_call.1} parent=1 // pred_fallthru
      _
    // Predicated region
    $region14: #{tpu_custom_call.1} parent=1 // pred_check
      _
    $region15: #{tpu_custom_call.1} parent=1 // pred_check_branch
      %47 = sbr.rel (0) target = $region17
    $region16: #{tpu_custom_call.1} parent=1 // pred_region
      %s49 = ssub.s32 16, 16
      %50 = vsyncadd [#allocation7], %s49
      %s52 = sshll.u32 [#allocation8], 4
      %s53 = int_to_ptr.vmem [resolvable:$true] %s52
      %55 = dma.hbm_to_vmem [thread:$0]  %s3, 16, %s53, [#allocation7]
    $region17: #{tpu_custom_call.1} parent=1 // pred_fallthru
      _
    // Predicated region
    $region18: #{tpu_custom_call.1} parent=1 // pred_check
      _
    $region19: #{tpu_custom_call.1} parent=1 // pred_check_branch
      %57 = sbr.rel (0) target = $region21
    $region20: #{tpu_custom_call.1} parent=1 // pred_region
      _
    $region21: #{tpu_custom_call.1} parent=1 // pred_fallthru
      _
    // Predicated region
    $region22: #{tpu_custom_call.1} parent=1 // pred_check
      _
    $region23: #{tpu_custom_call.1} parent=1 // pred_check_branch
      %59 = sbr.rel (0) target = $region25
    $region24: #{tpu_custom_call.1} parent=1 // pred_region
      _
    $region25: #{tpu_custom_call.1} parent=1 // pred_fallthru
      _
    // Predicated region
    $region26: #{tpu_custom_call.1} parent=1 // pred_check
      _
    $region27: #{tpu_custom_call.1} parent=1 // pred_check_branch
      %61 = sbr.rel (0) target = $region29
    $region28: #{tpu_custom_call.1} parent=1 // pred_region
      _
    $region29: #{tpu_custom_call.1} parent=1 // pred_fallthru
      _
    // Predicated region
    $region30: #{tpu_custom_call.1} parent=1 // pred_check
      _
    $region31: #{tpu_custom_call.1} parent=1 // pred_check_branch
      %63 = sbr.rel (0) target = $region33
    $region32: #{tpu_custom_call.1} parent=1 // pred_region
      _
    $region33: #{tpu_custom_call.1} parent=1 // pred_fallthru
      _
    // Predicated region
    $region34: #{tpu_custom_call.1} parent=1 // pred_check
      _
    $region35: #{tpu_custom_call.1} parent=1 // pred_check_branch
      %65 = sbr.rel (0) target = $region37
    $region36: #{tpu_custom_call.1} parent=1 // pred_region
      %66 = dma.done [#allocation4], 256
    $region37: #{tpu_custom_call.1} parent=1 // pred_fallthru
      _
    // Predicated region
    $region38: #{tpu_custom_call.1} parent=1 // pred_check
      _
    $region39: #{tpu_custom_call.1} parent=1 // pred_check_branch
      %68 = sbr.rel (0) target = $region41
    $region40: #{tpu_custom_call.1} parent=1 // pred_region
      %69 = dma.done [#allocation7], 512
    $region41: #{tpu_custom_call.1} parent=1 // pred_fallthru
      _
    // Predicated region
    $region42: #{tpu_custom_call.1} parent=1 // pred_check
      _
    $region43: #{tpu_custom_call.1} parent=1 // pred_check_branch
      %71 = sbr.rel (0) target = $region45
    $region44: #{tpu_custom_call.1} parent=1 // pred_region
      %72 = dma.done [#allocation7], 16
    $region45: #{tpu_custom_call.1} parent=1 // pred_fallthru
      _
    %v73 = vld [vmem:[#allocation3] sm:$0xff]
    %v74 = vld [vmem:[#allocation3 + $0x8] sm:$0xff]
    %v75 = vld [vmem:[%s1] sm:$0x3]
    %v76 = vld [vmem:[#allocation6] sm:$0xff]
    %v77 = vld [vmem:[#allocation6 + $0x8] sm:$0xff]
    %v78 = vld [vmem:[#allocation6 + $0x10] sm:$0xff]
    %v79 = vld [vmem:[#allocation6 + $0x18] sm:$0xff]
    %vm80 = vcmask 261120
    %v82 = vsel %vm80, %v73, 0
    %v85 = vsel %vm80, %v74, 0
    %87 = vmatprep.subr.mxu0 0.0
    %88 = vmatpush1.msra.mxu0 %v76
    %89 = vmatprep.subr.mxu0 0.0
    %90 = vmatpush1.msra.mxu0 %v77
    %91 = vmatprep.subr.mxu0 0.0
    %92 = vmatpush1.msra.mxu0 %v78
    %93 = vmatprep.subr.mxu0 0.0
    %94 = vmatpush1.msra.mxu0 %v79
    %95 = vmatprep.subr.mxu0 0.0
    %96 = vmatpush1.msra.mxu0 0.0
    %97 = vmatprep.subr.mxu0 0.0
    %98 = vmatpush1.msra.mxu0 0.0
    %99 = vmatprep.subr.mxu0 0.0
    %100 = vmatpush1.msra.mxu0 0.0
    %101 = vmatprep.subr.mxu0 0.0
    %102 = vmatpush1.msra.mxu0 0.0
    %103 = vmatprep.subr.mxu0 0.0
    %104 = vmatpush1.msra.mxu0 0.0
    %105 = vmatprep.subr.mxu0 0.0
    %106 = vmatpush1.msra.mxu0 0.0
    %107 = vmatprep.subr.mxu0 0.0
    %108 = vmatpush1.msra.mxu0 0.0
    %109 = vmatprep.subr.mxu0 0.0
    %110 = vmatpush1.msra.mxu0 0.0
    %111 = vmatprep.subr.mxu0 0.0
    %112 = vmatpush1.msra.mxu0 0.0
    %113 = vmatprep.subr.mxu0 0.0
    %114 = vmatpush1.msra.mxu0 0.0
    %115 = vmatprep.subr.mxu0 0.0
    %116 = vmatpush1.msra.mxu0 0.0
    %117 = vmatprep.subr.mxu0 0.0
    %118 = vmatpush1.msra.mxu0 0.0
    %119 = vmatprep.subr.mxu0 0.0
    %120 = vmatpush1.msra.mxu0 0.0
    %121 = vmatprep.subr.mxu0 0.0
    %122 = vmatpush1.msra.mxu0 0.0
    %123 = vmatprep.subr.mxu0 0.0
    %124 = vmatpush1.msra.mxu0 0.0
    %125 = vmatprep.subr.mxu0 0.0
    %126 = vmatpush1.msra.mxu0 0.0
    %127 = vmatprep.subr.mxu0 0.0
    %128 = vmatpush1.msra.mxu0 0.0
    %129 = vmatprep.subr.mxu0 0.0
    %130 = vmatpush1.msra.mxu0 0.0
    %131 = vmatprep.subr.mxu0 0.0
    %132 = vmatpush1.msra.mxu0 0.0
    %133 = vmatprep.subr.mxu0 0.0
    %134 = vmatpush1.msra.mxu0 0.0
    %135 = vmatprep.subr.mxu0 0.0
    %136 = vmatpush1.msra.mxu0 0.0
    %137 = vmatprep.subr.mxu0 0.0
    %138 = vmatpush1.msra.mxu0 0.0
    %139 = vmatprep.subr.mxu0 0.0
    %140 = vmatpush1.msra.mxu0 0.0
    %141 = vmatprep.subr.mxu0 0.0
    %142 = vmatpush1.msra.mxu0 0.0
    %143 = vmatprep.subr.mxu0 0.0
    %144 = vmatpush1.msra.mxu0 0.0
    %145 = vmatprep.subr.mxu0 0.0
    %146 = vmatpush1.msra.mxu0 0.0
    %147 = vmatprep.subr.mxu0 0.0
    %148 = vmatpush1.msra.mxu0 0.0
    %149 = vmatprep.subr.mxu0 0.0
    %150 = vmatpush1.msra.mxu0 0.0
    %151 = vmatprep.mubr.f32.mxu0 0.0
    %152 = vmatmul.mubr.f32.gmra.mrb[0].mxu0 %v82
    %v153 = vpop.f32.mrb[0].mxu0
    %v154 = vadd.f32 0.0, %v153
    %v155 = vpop.f32.mrb[0].mxu0
    %156 = vmatprep.mubr.f32.mxu0 0.0
    %157 = vmatmul.mubr.f32.gmra.mrb[0].mxu0 %v85
    %v158 = vpop.f32.mrb[0].mxu0
    %v159 = vadd.f32 0.0, %v158
    %v160 = vpop.f32.mrb[0].mxu0
    %161 = vdwg.mxu0
    %v162 = vld [vmem:[#allocation8] sm:$0x1]
    %v164 = vlaneseq
    %v165 = vshrl.u32 %v164, 7
    %v166 = vsub.s32 0, %v165
    %v167 = vrot.slane %v162, %v166
    %v169 = vadd.f32 %v154, %v167
    %v170 = vadd.f32 %v159, %v167
    %v171 = vld [vmem:[%s4] sm:$0xff]
    %v172 = vld [vmem:[%s4 + $0x8] sm:$0xff]
    %v173 = vld [vmem:[%s5] sm:$0x1]
    %v175 = vlaneseq
    %v176 = vshrl.u32 %v175, 7
    %v177 = vsub.s32 0, %v176
    %v178 = vrot.slane %v173, %v177
    %vm180 = vcmask 130048
    %v182 = vsel %vm180, %v75, 0
    %184 = vmatprep.subr.mxu0 0.0
    %185 = vmatpush1.msra.mxu0 %v171
    %186 = vmatprep.subr.mxu0 0.0
    %187 = vmatpush1.msra.mxu0 %v172
    %188 = vmatprep.subr.mxu0 0.0
    %189 = vmatpush1.msra.mxu0 0.0
    %190 = vmatprep.subr.mxu0 0.0
    %191 = vmatpush1.msra.mxu0 0.0
    %192 = vmatprep.subr.mxu0 0.0
    %193 = vmatpush1.msra.mxu0 0.0
    %194 = vmatprep.subr.mxu0 0.0
    %195 = vmatpush1.msra.mxu0 0.0
    %196 = vmatprep.subr.mxu0 0.0
    %197 = vmatpush1.msra.mxu0 0.0
    %198 = vmatprep.subr.mxu0 0.0
    %199 = vmatpush1.msra.mxu0 0.0
    %200 = vmatprep.subr.mxu0 0.0
    %201 = vmatpush1.msra.mxu0 0.0
    %202 = vmatprep.subr.mxu0 0.0
    %203 = vmatpush1.msra.mxu0 0.0
    %204 = vmatprep.subr.mxu0 0.0
    %205 = vmatpush1.msra.mxu0 0.0
    %206 = vmatprep.subr.mxu0 0.0
    %207 = vmatpush1.msra.mxu0 0.0
    %208 = vmatprep.subr.mxu0 0.0
    %209 = vmatpush1.msra.mxu0 0.0
    %210 = vmatprep.subr.mxu0 0.0
    %211 = vmatpush1.msra.mxu0 0.0
    %212 = vmatprep.subr.mxu0 0.0
    %213 = vmatpush1.msra.mxu0 0.0
    %214 = vmatprep.subr.mxu0 0.0
    %215 = vmatpush1.msra.mxu0 0.0
    %216 = vmatprep.subr.mxu0 0.0
    %217 = vmatpush1.msra.mxu0 0.0
    %218 = vmatprep.subr.mxu0 0.0
    %219 = vmatpush1.msra.mxu0 0.0
    %220 = vmatprep.subr.mxu0 0.0
    %221 = vmatpush1.msra.mxu0 0.0
    %222 = vmatprep.subr.mxu0 0.0
    %223 = vmatpush1.msra.mxu0 0.0
    %224 = vmatprep.subr.mxu0 0.0
    %225 = vmatpush1.msra.mxu0 0.0
    %226 = vmatprep.subr.mxu0 0.0
    %227 = vmatpush1.msra.mxu0 0.0
    %228 = vmatprep.subr.mxu0 0.0
    %229 = vmatpush1.msra.mxu0 0.0
    %230 = vmatprep.subr.mxu0 0.0
    %231 = vmatpush1.msra.mxu0 0.0
    %232 = vmatprep.subr.mxu0 0.0
    %233 = vmatpush1.msra.mxu0 0.0
    %234 = vmatprep.subr.mxu0 0.0
    %235 = vmatpush1.msra.mxu0 0.0
    %236 = vmatprep.subr.mxu0 0.0
    %237 = vmatpush1.msra.mxu0 0.0
    %238 = vmatprep.subr.mxu0 0.0
    %239 = vmatpush1.msra.mxu0 0.0
    %240 = vmatprep.subr.mxu0 0.0
    %241 = vmatpush1.msra.mxu0 0.0
    %242 = vmatprep.subr.mxu0 0.0
    %243 = vmatpush1.msra.mxu0 0.0
    %244 = vmatprep.subr.mxu0 0.0
    %245 = vmatpush1.msra.mxu0 0.0
    %246 = vmatprep.subr.mxu0 0.0
    %247 = vmatpush1.msra.mxu0 0.0
    %248 = vmatprep.mubr.f32.mxu0 0.0
    %249 = vmatmul.mubr.f32.gmra.mrb[0].mxu0 %v182
    %v250 = vpop.f32.mrb[0].mxu0
    %v251 = vadd.f32 %v178, %v250
    %v252 = vpop.f32.mrb[0].mxu0
    %253 = vdwg.mxu0
    %v256 = vunpack.c.l.s4 1966171168
    %v257 = vunpack.c.0.s8 %v256
    %v258 = vlaneseq
    %v259 = vshrl.u32 %v258, 7
    %v260 = vsub.s32 %v257, %v259
    %v261 = vrot.slane %v251, %v260
    %v262 = vcombine.high %v261, %v261
    %v264 = vunpack.c.l.s4 1966171168
    %v265 = vunpack.c.0.s8 %v264
    %v266 = vlaneseq
    %v267 = vshrl.u32 %v266, 7
    %v268 = vsub.s32 %v265, %v267
    %v269 = vrot.slane %v261, %v268
    %v271 = vunpack.c.l.s4 1966171168
    %v272 = vunpack.c.0.s8 %v271
    %v273 = vlaneseq
    %v274 = vshrl.u32 %v273, 7
    %v275 = vsub.s32 %v272, %v274
    %v276 = vrot.slane %v262, %v275
    %v277 = vlaneseq
    %v278 = vshrl.u32 %v277, 7
    %v279 = vsub.s32 0, %v278
    %v280 = vrot.slane %v269, %v279
    %v281 = vlaneseq
    %v282 = vshrl.u32 %v281, 7
    %v283 = vsub.s32 0, %v282
    %v284 = vrot.slane %v276, %v283
    %v287 = vadd.f32 %v169, %v280
    %v288 = vadd.f32 %v170, %v284
    %v289 = vtanh.pop %v287
    %v290 = vtanh.pop %v288
    %v291 = vld [vmem:[%s6] sm:$0x1]
    %v293 = vlaneseq
    %v294 = vshrl.u32 %v293, 7
    %v295 = vsub.s32 0, %v294
    %v296 = vrot.slane %v291, %v295
    %v298 = vmul.f32 %v289, %v296
    %v299 = vmul.f32 %v290, %v296
    %300 = vadd.xlane.f32.xlu0 %v298
    %v301 = vpop.xlane.xlu0 %300
    %302 = vadd.xlane.f32.xlu0 %v299
    %v303 = vpop.xlane.xlu0 %302
    %s304 = sld [smem:[#allocation2]]
    %v305 = vstv %s304
    %v306 = vadd.f32 %v301, %v305
    %v307 = vadd.f32 %v303, %v305
    %v310 = vlaneseq
    %v311 = vand.u32 %v310, 127
    %v312 = vlaneseq
    %v313 = vshrl.u32 %v312, 7
    %v314 = vsub.s32 %v311, %v313
    %v315 = vrot.slane %v306, %v314
    %v316 = vlaneseq
    %v317 = vshrl.u32 %v316, 7
    %v318 = vsub.s32 %v311, %v317
    %v319 = vrot.slane %v307, %v318
    %vm320 = vcmask 1041409
    %v321 = vsel %vm320, %v319, %v315
    %vm323 = vcmask 58368
    %v324 = vsel %vm323, %v321, -inf
    %325 = vmax.xlane.f32.xlu0 %v324
    %v326 = vpop.xlane.xlu0 %325
    %v328 = vlaneseq
    %v329 = vshrl.u32 %v328, 7
    %v330 = vsub.s32 0, %v329
    %v331 = vrot.slane %v326, %v330
    %v332 = vlaneseq
    %v333 = vshrl.u32 %v332, 7
    %v334 = vsub.s32 1, %v333
    %v335 = vrot.slane %v326, %v334
    %v338 = vsub.f32 %v306, %v331
    %v339 = vsub.f32 %v307, %v335
    %v340 = vmul.f32 %v338, 1.442695
    %v341 = vpow.pop %v340
    %v342 = vmul.f32 %v339, 1.442695
    %v343 = vpow.pop %v342
    %346 = vset.pattern.permute.xlu0 0
    %347 = vperm.xlu0 %346, %v341
    %v348 = vpop.permute.xlu0 %347
    %349 = vset.pattern.permute.xlu0 0
    %350 = vperm.xlu0 %349, %v343
    %v351 = vpop.permute.xlu0 %350
    %v352 = vlaneseq
    %v353 = vshrl.u32 %v352, 7
    %v354 = vsub.s32 %v311, %v353
    %v355 = vrot.slane %v348, %v354
    %v356 = vlaneseq
    %v357 = vshrl.u32 %v356, 7
    %v358 = vsub.s32 %v311, %v357
    %v359 = vrot.slane %v351, %v358
    %v360 = vsel %vm320, %v359, %v355
    %v362 = vsel %vm323, %v360, 0.0
    %363 = vadd.xlane.f32.xlu0 %v362
    %v364 = vpop.xlane.xlu0 %363
    %v365 = vrcp.pop %v364
    %v367 = vlaneseq
    %v368 = vshrl.u32 %v367, 7
    %v369 = vsub.s32 0, %v368
    %v370 = vrot.slane %v365, %v369
    %v371 = vlaneseq
    %v372 = vshrl.u32 %v371, 7
    %v373 = vsub.s32 1, %v372
    %v374 = vrot.slane %v365, %v373
    %v377 = vmul.f32 %v341, %v370
    %v378 = vmul.f32 %v343, %v374
    %380 = vset.pattern.permute.xlu0 0
    %381 = vperm.xlu0 %380, %v377
    %v382 = vpop.permute.xlu0 %381
    %385 = vset.pattern.permute.xlu0 0
    %386 = vperm.xlu0 %385, %v378
    %v387 = vpop.permute.xlu0 %386
    %v389 = vmul.f32 %v73, %v382
    %v390 = vmul.f32 %v74, %v387
    %v391 = vsel %vm80, %v389, 0.0
    %v392 = vrot.slane %v391, 4
    %v393 = vadd.f32 %v391, %v392
    %v394 = vrot.slane %v393, 2
    %v395 = vadd.f32 %v393, %v394
    %v396 = vrot.slane %v395, 1
    %v397 = vadd.f32 %v395, %v396
    %v398 = vsel %vm80, %v390, 0.0
    %v399 = vrot.slane %v398, 4
    %v400 = vadd.f32 %v398, %v399
    %v401 = vrot.slane %v400, 2
    %v402 = vadd.f32 %v400, %v401
    %v403 = vrot.slane %v402, 1
    %v404 = vadd.f32 %v402, %v403
    %v405 = vlaneseq
    %v406 = vshrl.u32 %v405, 7
    %v407 = vsub.s32 %v311, %v406
    %v408 = vrot.slane %v382, %v407
    %v409 = vlaneseq
    %v410 = vshrl.u32 %v409, 7
    %v411 = vsub.s32 %v311, %v410
    %v412 = vrot.slane %v387, %v411
    %v413 = vsel %vm320, %v412, %v408
    %415 = vst.msk [vmem:[#allocation9] sm:$0x3] %vm323, %v413
    %v418 = vsel %vm320, %v404, %v397
    %vm420 = vcmask 254976
    %421 = vst.msk [vmem:[#allocation10] sm:$0x3] %vm420, %v418
    // Predicated region
    $region46: #{tpu_custom_call.1} parent=1 // pred_check
      _
    $region47: #{tpu_custom_call.1} parent=1 // pred_check_branch
      %423 = sbr.rel (0) target = $region49
    $region48: #{tpu_custom_call.1} parent=1 // pred_region
      %s425 = ssub.s32 32, 32
      %426 = vsyncadd [#allocation5], %s425
      %s428 = sshll.u32 [#allocation9], 4
      %s429 = int_to_ptr.vmem [resolvable:$true] %s428
      %431 = dma.vmem_to_hbm [thread:$0]  %s429, 32, %s8, [#allocation5]
    $region49: #{tpu_custom_call.1} parent=1 // pred_fallthru
      _
    // Predicated region
    $region50: #{tpu_custom_call.1} parent=1 // pred_check
      _
    $region51: #{tpu_custom_call.1} parent=1 // pred_check_branch
      %433 = sbr.rel (0) target = $region53
    $region52: #{tpu_custom_call.1} parent=1 // pred_region
      %s435 = ssub.s32 32, 32
      %436 = vsyncadd [#allocation11], %s435
      %s438 = sshll.u32 [#allocation10], 4
      %s439 = int_to_ptr.vmem [resolvable:$true] %s438
      %441 = dma.vmem_to_hbm [thread:$0]  %s439, 32, %s9, [#allocation11]
    $region53: #{tpu_custom_call.1} parent=1 // pred_fallthru
      _
    // Predicated region
    $region54: #{tpu_custom_call.1} parent=1 // pred_check
      _
    $region55: #{tpu_custom_call.1} parent=1 // pred_check_branch
      %443 = sbr.rel (0) target = $region57
    $region56: #{tpu_custom_call.1} parent=1 // pred_region
      %444 = dma.done [#allocation5], 32
    $region57: #{tpu_custom_call.1} parent=1 // pred_fallthru
      _
    // Predicated region
    $region58: #{tpu_custom_call.1} parent=1 // pred_check
      _
    $region59: #{tpu_custom_call.1} parent=1 // pred_check_branch
      %446 = sbr.rel (0) target = $region61
    $region60: #{tpu_custom_call.1} parent=1 // pred_region
      %447 = dma.done [#allocation11], 32
    $region61: #{tpu_custom_call.1} parent=1 // pred_fallthru
      _
    %448 = vsyncpa [#allocation4], 1
    %449 = vsyncpa [#allocation7], 1
    %450 = vsyncpa [#allocation5], 1
    %451 = vsyncpa [#allocation11], 1

</llo_original>
